<compile_context>
chip_gen: v6e
topology: v6e:2x2x1
jax: 0.10.0
libtpu: 0.0.40
codegen_flags: <defaults>
</compile_context>

<pallas_src>
import math

import jax
import jax.numpy as jnp
from jax.experimental import pallas as pl
from jax.experimental.pallas import tpu as pltpu

DTYPE = jnp.bfloat16  # stand-in for torch .half() (fp16) of the CLIP model on TPU
_VMEM_LIMIT = 32 * 1024 * 1024  # safe on v7x (64 MiB physical); tiles are tiny now


# ---------------------------------------------------------------------------
# Kernel 1: incremental prompt update (aliased ctx-window rewrite).
# ---------------------------------------------------------------------------
def _ctx_head_update_kernel(head_ref, ctx_ref, out_ref):
    # head_ref/out_ref: (bc, head, D) tile of the (aliased) prompts buffer.
    # ctx_ref         : (n_ctx, D) shared across classes (the .expand()).
    bc, _, d = out_ref.shape
    n_ctx = ctx_ref.shape[0]
    # Dominant store: full aligned head tile (prefix + stale ctx + suffix head),
    # unmasked.  Then overwrite just the ctx rows (tiny masked store).
    out_ref[...] = head_ref[...]
    out_ref[:, 1:1 + n_ctx, :] = jnp.broadcast_to(
        ctx_ref[...][None, :, :], (bc, n_ctx, d))


def _head_rows(n_ctx, total, itemsize):
    """Smallest sublane-tile-aligned seq window covering rows [0, 1+n_ctx)."""
    need = 1 + n_ctx
    mult = 8 if itemsize >= 4 else 16  # sub-32-bit dtypes pack along sublanes
    h = ((need + mult - 1) // mult) * mult
    return total if h >= total else h


def update_prompts_ctx(prompts_base, ctx, *, head_rows, class_block=256):
    """Aliased rewrite of prompts[:, :head_rows, :] with fresh ctx.

    prompts_base: (n_cls, total, D) persistent buffer with prefix/suffix baked.
    Returns the same (donated) buffer with rows 1..1+n_ctx replaced by ctx.
    Rows >= head_rows are never touched (kept via input_output_aliases).
    """
    n_cls, total, d = prompts_base.shape
    n_ctx = ctx.shape[0]
    h = head_rows
    bc = max(1, min(class_block, n_cls))  # keep >=2 grid steps on v7x for 2-TC split
    itemsize = ctx.dtype.itemsize
    bytes_accessed = int((2 * n_cls * h * d + ctx.size) * itemsize)
    return pl.pallas_call(
        _ctx_head_update_kernel,
        out_shape=jax.ShapeDtypeStruct((n_cls, total, d), prompts_base.dtype),
        grid=(pl.cdiv(n_cls, bc),),
        in_specs=[
            pl.BlockSpec((bc, h, d), lambda i: (i, 0, 0)),   # aliased head tile
            pl.BlockSpec((n_ctx, d), lambda i: (0, 0)),      # shared ctx
        ],
        out_specs=pl.BlockSpec((bc, h, d), lambda i: (i, 0, 0)),
        input_output_aliases={0: 0},
        compiler_params=pltpu.CompilerParams(
            dimension_semantics=("parallel",),
            vmem_limit_bytes=_VMEM_LIMIT),
        cost_estimate=pl.CostEstimate(
            flops=0, transcendentals=0, bytes_accessed=bytes_accessed),
    )(prompts_base, ctx)


# ---------------------------------------------------------------------------
# Kernel 2: all Linear projections in ONE grid step.
#           y[i] = x_list[i] @ Wt[i] + b[i], i = 0..depth-1
# ---------------------------------------------------------------------------
def _make_fused_proj_kernel(depth):
    def kernel(*refs):
        x_refs = refs[:depth]
        wt_ref, b_ref, o_ref = refs[depth], refs[depth + 1], refs[depth + 2]
        for i in range(depth):  # depth is small & static -> fully unrolled
            acc = jnp.dot(x_refs[i][...], wt_ref[i, :, :],
                          preferred_element_type=jnp.float32)
            o_ref[i, :, :] = (acc + b_ref[i, :, :].astype(jnp.float32)
                              ).astype(o_ref.dtype)
    return kernel


def fused_linear(x_list, wt_stack, b_stack, out_dim):
    """x_list: depth arrays (n, K); wt_stack: (depth, K, Npad) pre-transposed,
    lane-padded; b_stack: (depth, 1, Npad). Returns (depth, n, out_dim)."""
    depth = len(x_list)
    n, k = x_list[0].shape
    n_pad = wt_stack.shape[-1]
    itemsize = wt_stack.dtype.itemsize
    bytes_accessed = int(
        (depth * n * k + wt_stack.size + b_stack.size + depth * n * n_pad)
        * itemsize)
    out = pl.pallas_call(
        _make_fused_proj_kernel(depth),
        out_shape=jax.ShapeDtypeStruct((depth, n, n_pad), wt_stack.dtype),
        grid=(1,),  # entire weight stack is only a few MB -> one invocation
        in_specs=([pl.BlockSpec((n, k), lambda i: (0, 0)) for _ in range(depth)]
                  + [pl.BlockSpec((depth, k, n_pad), lambda i: (0, 0, 0)),
                     pl.BlockSpec((depth, 1, n_pad), lambda i: (0, 0, 0))]),
        out_specs=pl.BlockSpec((depth, n, n_pad), lambda i: (0, 0, 0)),
        compiler_params=pltpu.CompilerParams(
            dimension_semantics=("arbitrary",),
            vmem_limit_bytes=_VMEM_LIMIT),
        cost_estimate=pl.CostEstimate(
            flops=2 * depth * n * k * n_pad, transcendentals=0,
            bytes_accessed=bytes_accessed),
    )(*x_list, wt_stack, b_stack)
    if n_pad != out_dim:
        out = out[..., :out_dim]  # drop lane padding outside the kernel
    return out


def _pad_lanes(x, target):
    pad = target - x.shape[-1]
    if pad == 0:
        return x
    return jnp.pad(x, [(0, 0)] * (x.ndim - 1) + [(0, pad)])


# ---------------------------------------------------------------------------
# Module-equivalent wrapper (deterministic, synthetic parameters)
# ---------------------------------------------------------------------------
class MultiModalPromptLearner:
    def __init__(self, key, *, n_cls, n_ctx, ctx_dim, vis_dim, seq_len,
                 prompt_depth, dtype=DTYPE, class_block=256):
        assert prompt_depth >= 1
        self.n_cls = n_cls
        self.n_ctx = n_ctx
        self.vis_dim = vis_dim
        self.compound_prompts_depth = prompt_depth

        keys = jax.random.split(key, 8 + 2 * prompt_depth)
        bound = 1.0 / math.sqrt(ctx_dim)

        # ctx_vectors ~ N(0, 0.02)
        self.ctx = (0.02 * jax.random.normal(keys[0], (n_ctx, ctx_dim))).astype(dtype)

        # self.proj = nn.Linear(ctx_dim, 768).half()   (768 -> vis_dim here)
        self.proj_w = jax.random.uniform(
            keys[1], (vis_dim, ctx_dim), minval=-bound, maxval=bound).astype(dtype)
        self.proj_b = jax.random.uniform(
            keys[2], (vis_dim,), minval=-bound, maxval=bound).astype(dtype)

        # compound_prompts_text: (depth-1) params of shape (n_ctx, ctx_dim)
        self.compound_prompts_text = [
            (0.02 * jax.random.normal(keys[3 + i], (n_ctx, ctx_dim))).astype(dtype)
            for i in range(prompt_depth - 1)
        ]

        # compound_prompt_projections = _get_clones(Linear(ctx_dim, 768), depth-1)
        # deepcopy clones share identical *initial* weights; kernel keeps
        # per-depth weight slots so it stays correct if clones diverge.
        cw = jax.random.uniform(
            keys[3 + prompt_depth], (vis_dim, ctx_dim),
            minval=-bound, maxval=bound).astype(dtype)
        cb = jax.random.uniform(
            keys[4 + prompt_depth], (vis_dim,),
            minval=-bound, maxval=bound).astype(dtype)
        self.compound_prompt_projections = [(cw, cb) for _ in range(prompt_depth - 1)]

        # TODO(synk): real CLIP token_embedding / tokenizer not reproduced; prefix
        # / suffix buffers are synthetic deterministic embeddings (correct shapes).
        self.token_prefix = jax.random.normal(
            keys[5 + prompt_depth], (n_cls, 1, ctx_dim)).astype(dtype)
        self.token_suffix = jax.random.normal(
            keys[6 + prompt_depth], (n_cls, seq_len - 1 - n_ctx, ctx_dim)).astype(dtype)

        # Persistent prompts buffer: prefix/suffix baked ONCE (init-time XLA
        # concat); ctx rows are placeholders rewritten by the aliased kernel.
        self._prompts_base = jnp.concatenate(
            [self.token_prefix,
             jnp.zeros((n_cls, n_ctx, ctx_dim), dtype),
             self.token_suffix], axis=1)
        total = 1 + n_ctx + self.token_suffix.shape[1]
        head = _head_rows(n_ctx, total, jnp.dtype(dtype).itemsize)

        # Kernel-layout params: pre-transposed ONCE, lane-padded, stacked.
        vis_pad = pl.cdiv(vis_dim, 128) * 128
        all_w = [self.proj_w] + [w for (w, _) in self.compound_prompt_projections]
        all_b = [self.proj_b] + [b for (_, b) in self.compound_prompt_projections]
        self._wt_stack = jnp.stack(
            [_pad_lanes(jnp.transpose(w), vis_pad) for w in all_w], axis=0)
        self._b_stack = jnp.stack(
            [_pad_lanes(b.reshape(1, vis_dim), vis_pad) for b in all_b], axis=0)

        def _fwd(prompts_base, ctx, wt_stack, b_stack, *compound):
            prompts = update_prompts_ctx(prompts_base, ctx, head_rows=head,
                                         class_block=class_block)
            proj_out = fused_linear((ctx,) + compound, wt_stack, b_stack, vis_dim)
            return prompts, proj_out

        # Donate arg 0 so the aliased prompts buffer is updated copy-free.
        self._forward_jit = jax.jit(_fwd, donate_argnums=(0,))

    def forward(self):
        prompts, proj_out = self._forward_jit(
            self._prompts_base, self.ctx, self._wt_stack, self._b_stack,
            *self.compound_prompts_text)
        # Keep the (donated, in-place updated) buffer for the next call.
        self._prompts_base = prompts
        ctx_proj = proj_out[0]
        visual_deep_prompts = [proj_out[1 + i]
                               for i in range(self.compound_prompts_depth - 1)]
        return prompts, ctx_proj, self.compound_prompts_text, visual_deep_prompts


# ---------------------------------------------------------------------------
# Pure-JAX reference for validation
# ---------------------------------------------------------------------------
def _reference(m: MultiModalPromptLearner):
    ctx_b = jnp.broadcast_to(m.ctx[None], (m.n_cls,) + m.ctx.shape)
    prompts = jnp.concatenate([m.token_prefix, ctx_b, m.token_suffix], axis=1)
    lin = lambda x, w, b: (x.astype(jnp.float32) @ w.astype(jnp.float32).T
                           + b.astype(jnp.float32))
    ctx_proj = lin(m.ctx, m.proj_w, m.proj_b)
    vdp = [lin(p, w, b) for p, (w, b) in zip(m.compound_prompts_text,
                                             m.compound_prompt_projections)]
    return prompts, ctx_proj, vdp


def _run_and_check(m, *, exp_prompts_shape, exp_proj_shape):
    prompts, ctx_proj, compound_text, visual_deep = m.forward()
    jax.block_until_ready((prompts, ctx_proj, visual_deep))
    r_prompts, r_ctx_proj, r_vdp = _reference(m)
    assert prompts.shape == exp_prompts_shape and prompts.dtype == DTYPE
    assert ctx_proj.shape == exp_proj_shape and ctx_proj.dtype == DTYPE
    assert len(compound_text) == m.compound_prompts_depth - 1
    assert len(visual_deep) == m.compound_prompts_depth - 1
    assert jnp.array_equal(prompts.astype(jnp.float32),
                           r_prompts.astype(jnp.float32))
    assert jnp.allclose(ctx_proj.astype(jnp.float32), r_ctx_proj,
                        atol=5e-2, rtol=5e-2)
    for got, want in zip(visual_deep, r_vdp):
        assert got.shape == exp_proj_shape and got.dtype == DTYPE
        assert jnp.allclose(got.astype(jnp.float32), want, atol=5e-2, rtol=5e-2)


if __name__ == "__main__":
    key = jax.random.PRNGKey(0)
    k1, k2 = jax.random.split(key)

    # Case 1: tiny shapes (head == full seq since seq_len < 16), single class block.
    m1 = MultiModalPromptLearner(
        k1, n_cls=2, n_ctx=4, ctx_dim=32, vis_dim=64, seq_len=8, prompt_depth=3)
    _run_and_check(m1, exp_prompts_shape=(2, 8, 32), exp_proj_shape=(4, 64))
    # Second forward: exercises the donated/aliased persistent-buffer reuse path.
    _run_and_check(m1, exp_prompts_shape=(2, 8, 32), exp_proj_shape=(4, 64))

    # Case 2: head (16) < seq (24), n_cls not a multiple of class_block
    # (edge-block clamping), multiple grid steps, prompt_depth=2.
    m2 = MultiModalPromptLearner(
        k2, n_cls=5, n_ctx=4, ctx_dim=32, vis_dim=64, seq_len=24, prompt_depth=2,
        class_block=2)
    _run_and_check(m2, exp_prompts_shape=(5, 24, 32), exp_proj_shape=(4, 64))

    print("KERNEL_OK")
</pallas_src>

<mosaic_0001>
module attributes {stable_mosaic.version = 11 : i64} {
  func.func @kernel(%arg0: i32, %arg1: memref<4x32xbf16, #tpu.memory_space<vmem>>, %arg2: memref<4x32xbf16, #tpu.memory_space<vmem>>, %arg3: memref<4x32xbf16, #tpu.memory_space<vmem>>, %arg4: memref<3x32x128xbf16, #tpu.memory_space<vmem>>, %arg5: memref<3x1x128xbf16, #tpu.memory_space<vmem>>, %arg6: memref<3x4x128xbf16, #tpu.memory_space<vmem>>) attributes {dimension_semantics = [#tpu.dimension_semantics<arbitrary>], iteration_bounds = array<i64: 1>, scalar_prefetch = 0 : i64, scratch_operands = 0 : i64, tpu.core_type = #tpu.core_type<tc>, window_params = [{pipeline_mode = #tpu.pipeline_mode<synchronous>, transform_indices = @transform_0, window_bounds = array<i64: 4, 32>}, {pipeline_mode = #tpu.pipeline_mode<synchronous>, transform_indices = @transform_1, window_bounds = array<i64: 4, 32>}, {pipeline_mode = #tpu.pipeline_mode<synchronous>, transform_indices = @transform_2, window_bounds = array<i64: 4, 32>}, {pipeline_mode = #tpu.pipeline_mode<synchronous>, transform_indices = @transform_3, window_bounds = array<i64: 3, 32, 128>}, {pipeline_mode = #tpu.pipeline_mode<synchronous>, transform_indices = @transform_4, window_bounds = array<i64: 3, 1, 128>}, {pipeline_mode = #tpu.pipeline_mode<synchronous>, transform_indices = @transform_5, window_bounds = array<i64: 3, 4, 128>}]} {
    %c0 = arith.constant 0 : index
    %c0_0 = arith.constant 0 : index
    %0 = vector.load %arg1[%c0, %c0_0] : memref<4x32xbf16, #tpu.memory_space<vmem>>, vector<4x32xbf16>
    %c0_1 = arith.constant 0 : index
    %c0_2 = arith.constant 0 : index
    %c0_3 = arith.constant 0 : index
    %1 = vector.load %arg4[%c0_1, %c0_2, %c0_3] : memref<3x32x128xbf16, #tpu.memory_space<vmem>>, vector<1x32x128xbf16>
    %2 = vector.shape_cast %1 : vector<1x32x128xbf16> to vector<32x128xbf16>
    %cst = arith.constant dense<0.000000e+00> : vector<4x128xf32>
    %3 = tpu.matmul %0, %2, %cst {dimension_numbers = #tpu.dot_dimension_numbers<[1], [0], [0], [1], [0, 0, 1, 1], [], []>} : vector<4x32xbf16>, vector<32x128xbf16>, vector<4x128xf32> -> vector<4x128xf32>
    %c0_4 = arith.constant 0 : index
    %c0_5 = arith.constant 0 : index
    %c0_6 = arith.constant 0 : index
    %4 = vector.load %arg5[%c0_4, %c0_5, %c0_6] : memref<3x1x128xbf16, #tpu.memory_space<vmem>>, vector<1x1x128xbf16>
    %5 = vector.shape_cast %4 : vector<1x1x128xbf16> to vector<1x128xbf16>
    %6 = arith.extf %5 : vector<1x128xbf16> to vector<1x128xf32>
    %7 = vector.broadcast %6 : vector<1x128xf32> to vector<4x128xf32>
    %8 = arith.addf %3, %7 : vector<4x128xf32>
    %9 = arith.truncf %8 : vector<4x128xf32> to vector<4x128xbf16>
    %c0_7 = arith.constant 0 : index
    %c0_8 = arith.constant 0 : index
    %c0_9 = arith.constant 0 : index
    %10 = vector.load %arg6[%c0_7, %c0_8, %c0_9] : memref<3x4x128xbf16, #tpu.memory_space<vmem>>, vector<1x4x128xbf16>
    %11 = vector.shape_cast %10 : vector<1x4x128xbf16> to vector<4x128xbf16>
    %12 = vector.shape_cast %9 : vector<4x128xbf16> to vector<1x4x128xbf16>
    tpu.vector_store %arg6[%c0_7, %c0_8, %c0_9], %12 {strides = array<i32>} : memref<3x4x128xbf16, #tpu.memory_space<vmem>>, vector<1x4x128xbf16>,
    %c0_10 = arith.constant 0 : index
    %c0_11 = arith.constant 0 : index
    %13 = vector.load %arg2[%c0_10, %c0_11] : memref<4x32xbf16, #tpu.memory_space<vmem>>, vector<4x32xbf16>
    %c1 = arith.constant 1 : index
    %c0_12 = arith.constant 0 : index
    %c0_13 = arith.constant 0 : index
    %14 = vector.load %arg4[%c1, %c0_12, %c0_13] : memref<3x32x128xbf16, #tpu.memory_space<vmem>>, vector<1x32x128xbf16>
    %15 = vector.shape_cast %14 : vector<1x32x128xbf16> to vector<32x128xbf16>
    %cst_14 = arith.constant dense<0.000000e+00> : vector<4x128xf32>
    %16 = tpu.matmul %13, %15, %cst_14 {dimension_numbers = #tpu.dot_dimension_numbers<[1], [0], [0], [1], [0, 0, 1, 1], [], []>} : vector<4x32xbf16>, vector<32x128xbf16>, vector<4x128xf32> -> vector<4x128xf32>
    %c1_15 = arith.constant 1 : index
    %c0_16 = arith.constant 0 : index
    %c0_17 = arith.constant 0 : index
    %17 = vector.load %arg5[%c1_15, %c0_16, %c0_17] : memref<3x1x128xbf16, #tpu.memory_space<vmem>>, vector<1x1x128xbf16>
    %18 = vector.shape_cast %17 : vector<1x1x128xbf16> to vector<1x128xbf16>
    %19 = arith.extf %18 : vector<1x128xbf16> to vector<1x128xf32>
    %20 = vector.broadcast %19 : vector<1x128xf32> to vector<4x128xf32>
    %21 = arith.addf %16, %20 : vector<4x128xf32>
    %22 = arith.truncf %21 : vector<4x128xf32> to vector<4x128xbf16>
    %c1_18 = arith.constant 1 : index
    %c0_19 = arith.constant 0 : index
    %c0_20 = arith.constant 0 : index
    %23 = vector.load %arg6[%c1_18, %c0_19, %c0_20] : memref<3x4x128xbf16, #tpu.memory_space<vmem>>, vector<1x4x128xbf16>
    %24 = vector.shape_cast %23 : vector<1x4x128xbf16> to vector<4x128xbf16>
    %25 = vector.shape_cast %22 : vector<4x128xbf16> to vector<1x4x128xbf16>
    tpu.vector_store %arg6[%c1_18, %c0_19, %c0_20], %25 {strides = array<i32>} : memref<3x4x128xbf16, #tpu.memory_space<vmem>>, vector<1x4x128xbf16>,
    %c0_21 = arith.constant 0 : index
    %c0_22 = arith.constant 0 : index
    %26 = vector.load %arg3[%c0_21, %c0_22] : memref<4x32xbf16, #tpu.memory_space<vmem>>, vector<4x32xbf16>
    %c2 = arith.constant 2 : index
    %c0_23 = arith.constant 0 : index
    %c0_24 = arith.constant 0 : index
    %27 = vector.load %arg4[%c2, %c0_23, %c0_24] : memref<3x32x128xbf16, #tpu.memory_space<vmem>>, vector<1x32x128xbf16>
    %28 = vector.shape_cast %27 : vector<1x32x128xbf16> to vector<32x128xbf16>
    %cst_25 = arith.constant dense<0.000000e+00> : vector<4x128xf32>
    %29 = tpu.matmul %26, %28, %cst_25 {dimension_numbers = #tpu.dot_dimension_numbers<[1], [0], [0], [1], [0, 0, 1, 1], [], []>} : vector<4x32xbf16>, vector<32x128xbf16>, vector<4x128xf32> -> vector<4x128xf32>
    %c2_26 = arith.constant 2 : index
    %c0_27 = arith.constant 0 : index
    %c0_28 = arith.constant 0 : index
    %30 = vector.load %arg5[%c2_26, %c0_27, %c0_28] : memref<3x1x128xbf16, #tpu.memory_space<vmem>>, vector<1x1x128xbf16>
    %31 = vector.shape_cast %30 : vector<1x1x128xbf16> to vector<1x128xbf16>
    %32 = arith.extf %31 : vector<1x128xbf16> to vector<1x128xf32>
    %33 = vector.broadcast %32 : vector<1x128xf32> to vector<4x128xf32>
    %34 = arith.addf %29, %33 : vector<4x128xf32>
    %35 = arith.truncf %34 : vector<4x128xf32> to vector<4x128xbf16>
    %c2_29 = arith.constant 2 : index
    %c0_30 = arith.constant 0 : index
    %c0_31 = arith.constant 0 : index
    %36 = vector.load %arg6[%c2_29, %c0_30, %c0_31] : memref<3x4x128xbf16, #tpu.memory_space<vmem>>, vector<1x4x128xbf16>
    %37 = vector.shape_cast %36 : vector<1x4x128xbf16> to vector<4x128xbf16>
    %38 = vector.shape_cast %35 : vector<4x128xbf16> to vector<1x4x128xbf16>
    tpu.vector_store %arg6[%c2_29, %c0_30, %c0_31], %38 {strides = array<i32>} : memref<3x4x128xbf16, #tpu.memory_space<vmem>>, vector<1x4x128xbf16>,
    return
  }
  func.func @transform_0(%arg0: i32) -> (i32, i32) {
    %c0_i32 = arith.constant 0 : i32
    %c0_i32_0 = arith.constant 0 : i32
    %c0_i32_1 = arith.constant 0 : i32
    return %c0_i32, %c0_i32_0 : i32, i32
  }
  func.func @transform_1(%arg0: i32) -> (i32, i32) {
    %c0_i32 = arith.constant 0 : i32
    %c0_i32_0 = arith.constant 0 : i32
    %c0_i32_1 = arith.constant 0 : i32
    return %c0_i32, %c0_i32_0 : i32, i32
  }
  func.func @transform_2(%arg0: i32) -> (i32, i32) {
    %c0_i32 = arith.constant 0 : i32
    %c0_i32_0 = arith.constant 0 : i32
    %c0_i32_1 = arith.constant 0 : i32
    return %c0_i32, %c0_i32_0 : i32, i32
  }
  func.func @transform_3(%arg0: i32) -> (i32, i32, i32) {
    %c0_i32 = arith.constant 0 : i32
    %c0_i32_0 = arith.constant 0 : i32
    %c0_i32_1 = arith.constant 0 : i32
    %c0_i32_2 = arith.constant 0 : i32
    return %c0_i32, %c0_i32_0, %c0_i32_1 : i32, i32, i32
  }
  func.func @transform_4(%arg0: i32) -> (i32, i32, i32) {
    %c0_i32 = arith.constant 0 : i32
    %c0_i32_0 = arith.constant 0 : i32
    %c0_i32_1 = arith.constant 0 : i32
    %c0_i32_2 = arith.constant 0 : i32
    return %c0_i32, %c0_i32_0, %c0_i32_1 : i32, i32, i32
  }
  func.func @transform_5(%arg0: i32) -> (i32, i32, i32) {
    %c0_i32 = arith.constant 0 : i32
    %c0_i32_0 = arith.constant 0 : i32
    %c0_i32_1 = arith.constant 0 : i32
    %c0_i32_2 = arith.constant 0 : i32
    return %c0_i32, %c0_i32_0, %c0_i32_1 : i32, i32, i32
  }
}

module attributes {stable_mosaic.version = 11 : i64} {
  func.func @_ctx_head_update_kernel(%arg0: i32, %arg1: memref<2x8x32xbf16, #tpu.memory_space<vmem>>, %arg2: memref<4x32xbf16, #tpu.memory_space<vmem>>, %arg3: memref<2x8x32xbf16, #tpu.memory_space<vmem>>) attributes {dimension_semantics = [#tpu.dimension_semantics<parallel>], iteration_bounds = array<i64: 1>, scalar_prefetch = 0 : i64, scratch_operands = 0 : i64, tpu.core_type = #tpu.core_type<tc>, window_params = [{transform_indices = @transform_0, window_bounds = array<i64: 2, 8, 32>}, {pipeline_mode = #tpu.pipeline_mode<synchronous>, transform_indices = @transform_1, window_bounds = array<i64: 4, 32>}, {transform_indices = @transform_2, window_bounds = array<i64: 2, 8, 32>}]} {
    %c0 = arith.constant 0 : index
    %c0_0 = arith.constant 0 : index
    %c0_1 = arith.constant 0 : index
    %0 = vector.load %arg1[%c0, %c0_0, %c0_1] : memref<2x8x32xbf16, #tpu.memory_space<vmem>>, vector<2x8x32xbf16>
    %c0_2 = arith.constant 0 : index
    %c0_3 = arith.constant 0 : index
    %c0_4 = arith.constant 0 : index
    %1 = vector.load %arg3[%c0_2, %c0_3, %c0_4] : memref<2x8x32xbf16, #tpu.memory_space<vmem>>, vector<2x8x32xbf16>
    tpu.vector_store %arg3[%c0_2, %c0_3, %c0_4], %0 {strides = array<i32>} : memref<2x8x32xbf16, #tpu.memory_space<vmem>>, vector<2x8x32xbf16>,
    %c0_5 = arith.constant 0 : index
    %c0_6 = arith.constant 0 : index
    %2 = vector.load %arg2[%c0_5, %c0_6] : memref<4x32xbf16, #tpu.memory_space<vmem>>, vector<4x32xbf16>
    %3 = vector.shape_cast %2 : vector<4x32xbf16> to vector<1x4x32xbf16>
    %4 = vector.shape_cast %3 : vector<1x4x32xbf16> to vector<1x4x32xbf16>
    %5 = vector.broadcast %4 : vector<1x4x32xbf16> to vector<2x4x32xbf16>
    %c0_7 = arith.constant 0 : index
    %c1 = arith.constant 1 : index
    %c0_8 = arith.constant 0 : index
    %6 = vector.load %arg3[%c0_7, %c1, %c0_8] : memref<2x8x32xbf16, #tpu.memory_space<vmem>>, vector<2x4x32xbf16>
    tpu.vector_store %arg3[%c0_7, %c1, %c0_8], %5 {strides = array<i32>} : memref<2x8x32xbf16, #tpu.memory_space<vmem>>, vector<2x4x32xbf16>,
    return
  }
  func.func @transform_0(%arg0: i32) -> (i32, i32, i32) {
    %c0_i32 = arith.constant 0 : i32
    %c0_i32_0 = arith.constant 0 : i32
    %c0_i32_1 = arith.constant 0 : i32
    return %arg0, %c0_i32, %c0_i32_0 : i32, i32, i32
  }
  func.func @transform_1(%arg0: i32) -> (i32, i32) {
    %c0_i32 = arith.constant 0 : i32
    %c0_i32_0 = arith.constant 0 : i32
    %c0_i32_1 = arith.constant 0 : i32
    return %c0_i32, %c0_i32_0 : i32, i32
  }
  func.func @transform_2(%arg0: i32) -> (i32, i32, i32) {
    %c0_i32 = arith.constant 0 : i32
    %c0_i32_0 = arith.constant 0 : i32
    %c0_i32_1 = arith.constant 0 : i32
    return %arg0, %c0_i32, %c0_i32_0 : i32, i32, i32
  }
}

</mosaic_0001>

<llo_original>
// kernel: _fwd.2
$region0: #{_fwd.2}
  #allocation0 [shape = 'u32[]', space=smem, size = 0x4, offset = 0x4, fixed_abs, tag = 'smem constant byte address 0x4 - core index']
  #allocation1 [shape = 'u32[144,128]{1,0:T(1,128)}', space=vmem, size = 0x12000, scoped, tag = 'internal scratch']
  %s0 = inlined_call_operand.vmem [shape: bf16[2,8,32], index: 0, kind: input, shape index: {}, may-alias: {0,2}]
  %s1 = inlined_call_operand.hbm [shape: bf16[4,32], index: 1, kind: input, shape index: {}]
  %s2 = inlined_call_operand.vmem [shape: bf16[2,8,32], index: 2, kind: output, shape index: {}, may-alias: {0,2}]
  %s3 = sld [smem:[#allocation0]]
  $region22: #{_fwd.2} parent=0
    _
  %s5 = ssub.s32 1, %s3
  %s6 = scalar_select 0, %s5, %s3
  $region1: #{_fwd.2} parent=0
    #allocation2 [shape = 'u8[1024]{0}', space=vmem, size = 0x400, scoped, tag = 'input window, operand 1, single buffered']
    #allocation3 [shape = 's32[1]{0}', space=sflag, size = 0x4, scoped, tag = 'scoped memory for _fwd.2']
    %7 = vsyncpa [#allocation3], 0
    // Predicated region
    $region2: #{_fwd.2} parent=1 // pred_check
      _
    $region3: #{_fwd.2} parent=1 // pred_check_branch
      %9 = sbr.rel (0) target = $region5
    $region4: #{_fwd.2} parent=1 // pred_region
      _
    $region5: #{_fwd.2} parent=1 // pred_fallthru
      _
    // Predicated region
    $region6: #{_fwd.2} parent=1 // pred_check
      _
    $region7: #{_fwd.2} parent=1 // pred_check_branch
      %11 = sbr.rel (0) target = $region9
    $region8: #{_fwd.2} parent=1 // pred_region
      %s13 = ssub.s32 32, 32
      %14 = vsyncadd [#allocation3], %s13
      %s16 = sshll.u32 [#allocation2], 4
      %s17 = int_to_ptr.vmem [resolvable:$true] %s16
      %19 = dma.hbm_to_vmem [thread:$0]  %s1, 32, %s17, [#allocation3]
    $region9: #{_fwd.2} parent=1 // pred_fallthru
      _
    // Predicated region
    $region10: #{_fwd.2} parent=1 // pred_check
      _
    $region11: #{_fwd.2} parent=1 // pred_check_branch
      %21 = sbr.rel (0) target = $region13
    $region12: #{_fwd.2} parent=1 // pred_region
      %22 = dma.done [#allocation3], 32
    $region13: #{_fwd.2} parent=1 // pred_fallthru
      _
    %v23 = vld [vmem:[%s0] sm:$0xf]
    %v24 = vld [vmem:[%s0 + $0x4] sm:$0xf]
    %vm25 = vcmask 257024
    %26 = vst.msk [vmem:[%s2] sm:$0xf] %vm25, %v23
    %27 = vst.msk [vmem:[%s2 + $0x4] sm:$0xf] %vm25, %v24
    %v28 = vld [vmem:[#allocation2] sm:$0x3]
    %v31 = vunpack.c.l.s4 1983009808
    %v32 = vunpack.c.0.s8 %v31
    %v33 = vlaneseq
    %v34 = vshrl.u32 %v33, 7
    %v35 = vsub.s32 %v32, %v34
    %v36 = vrot.slane %v28, %v35
    %v38 = vshrl.u32 %v36, 16
    %v40 = vrot.slane %v38, 7
    %v41 = vshll.u32 %v36, 16
    %v43 = vor.u32 %v40, %v41
    %vm45 = vcmask 256000
    %vm46 = vsmask.f32 2306
    %vm47 = vmand %vm45, %vm46
    %v48 = vld [vmem:[%s2] sm:$0x7]
    %v49 = vsel %vm47, %v43, %v48
    %50 = vst [vmem:[%s2] sm:$0x7] %v49
    %v51 = vld [vmem:[%s2 + $0x4] sm:$0x7]
    %v52 = vsel %vm47, %v43, %v51
    %53 = vst [vmem:[%s2 + $0x4] sm:$0x7] %v52
    // Predicated region
    $region14: #{_fwd.2} parent=1 // pred_check
      _
    $region15: #{_fwd.2} parent=1 // pred_check_branch
      %55 = sbr.rel (0) target = $region17
    $region16: #{_fwd.2} parent=1 // pred_region
      _
    $region17: #{_fwd.2} parent=1 // pred_fallthru
      _
    // Predicated region
    $region18: #{_fwd.2} parent=1 // pred_check
      _
    $region19: #{_fwd.2} parent=1 // pred_check_branch
      %57 = sbr.rel (0) target = $region21
    $region20: #{_fwd.2} parent=1 // pred_region
      _
    $region21: #{_fwd.2} parent=1 // pred_fallthru
      _
    %58 = vsyncpa [#allocation3], 1

// kernel: _fwd.3
$region0: #{_fwd.3}
  #allocation0 [shape = 'u32[]', space=smem, size = 0x4, offset = 0x4, fixed_abs, tag = 'smem constant byte address 0x4 - core index']
  #allocation1 [shape = 'u32[144,128]{1,0:T(1,128)}', space=vmem, size = 0x12000, scoped, tag = 'internal scratch']
  %s0 = inlined_call_operand.vmem [shape: bf16[4,32], index: 0, kind: input, shape index: {}]
  %s1 = inlined_call_operand.vmem [shape: bf16[4,32], index: 1, kind: input, shape index: {}]
  %s2 = inlined_call_operand.vmem [shape: bf16[4,32], index: 2, kind: input, shape index: {}]
  %s3 = inlined_call_operand.hbm [shape: bf16[3,32,128], index: 3, kind: input, shape index: {}]
  %s4 = inlined_call_operand.vmem [shape: bf16[3,1,128], index: 4, kind: input, shape index: {}]
  %s5 = inlined_call_operand.hbm [shape: bf16[3,4,128], index: 5, kind: output, shape index: {}]
  %s6 = sld [smem:[#allocation0]]
  $region34: #{_fwd.3} parent=0
    _
  %s8 = ssub.s32 1, %s6
  %s9 = scalar_select 0, %s8, %s6
  $region1: #{_fwd.3} parent=0
    #allocation2 [shape = 'u8[24576]{0}', space=vmem, size = 0x6000, scoped, tag = 'input window, operand 3, single buffered']
    #allocation3 [shape = 's32[1]{0}', space=sflag, size = 0x4, scoped, tag = 'scoped memory for _fwd.3']
    #allocation4 [shape = 's32[1]{0}', space=sflag, size = 0x4, scoped, tag = 'scoped memory for _fwd.3']
    #allocation5 [shape = 'u8[3072]{0}', space=vmem, size = 0xc00, scoped, tag = 'output window, operand 0, single buffered']
    %10 = vsyncpa [#allocation3], 0
    %11 = vsyncpa [#allocation4], 0
    // Predicated region
    $region2: #{_fwd.3} parent=1 // pred_check
      _
    $region3: #{_fwd.3} parent=1 // pred_check_branch
      %13 = sbr.rel (0) target = $region5
    $region4: #{_fwd.3} parent=1 // pred_region
      _
    $region5: #{_fwd.3} parent=1 // pred_fallthru
      _
    // Predicated region
    $region6: #{_fwd.3} parent=1 // pred_check
      _
    $region7: #{_fwd.3} parent=1 // pred_check_branch
      %15 = sbr.rel (0) target = $region9
    $region8: #{_fwd.3} parent=1 // pred_region
      _
    $region9: #{_fwd.3} parent=1 // pred_fallthru
      _
    // Predicated region
    $region10: #{_fwd.3} parent=1 // pred_check
      _
    $region11: #{_fwd.3} parent=1 // pred_check_branch
      %17 = sbr.rel (0) target = $region13
    $region12: #{_fwd.3} parent=1 // pred_region
      _
    $region13: #{_fwd.3} parent=1 // pred_fallthru
      _
    // Predicated region
    $region14: #{_fwd.3} parent=1 // pred_check
      _
    $region15: #{_fwd.3} parent=1 // pred_check_branch
      %19 = sbr.rel (0) target = $region17
    $region16: #{_fwd.3} parent=1 // pred_region
      %s21 = ssub.s32 768, 768
      %22 = vsyncadd [#allocation3], %s21
      %s23 = sshll.u32 [#allocation2], 4
      %s24 = int_to_ptr.vmem [resolvable:$true] %s23
      %29 = dma.hbm_to_vmem [thread:$0]  %s3, 768, %s24, [#allocation3], 64, 64, 4
    $region17: #{_fwd.3} parent=1 // pred_fallthru
      _
    // Predicated region
    $region18: #{_fwd.3} parent=1 // pred_check
      _
    $region19: #{_fwd.3} parent=1 // pred_check_branch
      %31 = sbr.rel (0) target = $region21
    $region20: #{_fwd.3} parent=1 // pred_region
      _
    $region21: #{_fwd.3} parent=1 // pred_fallthru
      _
    // Predicated region
    $region22: #{_fwd.3} parent=1 // pred_check
      _
    $region23: #{_fwd.3} parent=1 // pred_check_branch
      %33 = sbr.rel (0) target = $region25
    $region24: #{_fwd.3} parent=1 // pred_region
      %34 = dma.done [#allocation3], 768
    $region25: #{_fwd.3} parent=1 // pred_fallthru
      _
    %v36 = vld [vmem:[%s0] sm:$0x3]
    %v37 = vld [vmem:[#allocation2] sm:$0xf]
    %v38 = vld [vmem:[#allocation2 + $0x4] sm:$0xf]
    %v39 = vld [vmem:[#allocation2 + $0x8] sm:$0xf]
    %v40 = vld [vmem:[#allocation2 + $0xc] sm:$0xf]
    %v41 = vld [vmem:[%s4] sm:$0x1]
    %v42 = vunpack.c.l.bf16 %v41
    %v43 = vlaneseq
    %v44 = vshrl.u32 %v43, 7
    %v45 = vsub.s32 0, %v44
    %v46 = vrot.slane %v42, %v45
    %v51 = vunpack.c.l.b16 %v37
    %v52 = vunpack.c.l.b16 %v38
    %v53 = vunpack.c.l.b16 %v39
    %v54 = vunpack.c.l.b16 %v40
    %v55 = vpack.c.b16 %v52, %v51
    %v56 = vpack.c.b16 %v54, %v53
    %vm59 = vcmask 261120
    %v61 = vsel %vm59, %v36, 0
    %63 = vmatprep.subr.bf16.mxu0 0
    %64 = vmatpush1.bf16.msra.mxu0 0
    %65 = vmatprep.subr.bf16.mxu0 0
    %66 = vmatpush1.bf16.msra.mxu0 0
    %67 = vmatprep.subr.bf16.mxu0 0
    %68 = vmatpush1.bf16.msra.mxu0 0
    %69 = vmatprep.subr.bf16.mxu0 0
    %70 = vmatpush1.bf16.msra.mxu0 0
    %71 = vmatprep.subr.bf16.mxu0 0
    %72 = vmatpush1.bf16.msra.mxu0 0
    %73 = vmatprep.subr.bf16.mxu0 0
    %74 = vmatpush1.bf16.msra.mxu0 0
    %75 = vmatprep.subr.bf16.mxu0 0
    %76 = vmatpush1.bf16.msra.mxu0 %v56
    %77 = vmatprep.subr.bf16.mxu0 0
    %78 = vmatpush1.bf16.msra.mxu0 %v55
    %79 = vmatprep.subr.bf16.mxu0 0
    %80 = vmatpush2.bf16.msra.mxu0 0
    %81 = vmatprep.subr.bf16.mxu0 0
    %82 = vmatpush2.bf16.msra.mxu0 0
    %83 = vmatprep.subr.bf16.mxu0 0
    %84 = vmatpush2.bf16.msra.mxu0 0
    %85 = vmatprep.subr.bf16.mxu0 0
    %86 = vmatpush2.bf16.msra.mxu0 0
    %87 = vmatprep.subr.bf16.mxu0 0
    %88 = vmatpush2.bf16.msra.mxu0 0
    %89 = vmatprep.subr.bf16.mxu0 0
    %90 = vmatpush2.bf16.msra.mxu0 0
    %91 = vmatprep.subr.bf16.mxu0 0
    %92 = vmatpush2.bf16.msra.mxu0 0
    %93 = vmatprep.subr.bf16.mxu0 0
    %94 = vmatpush2.bf16.msra.mxu0 0
    %95 = vmatprep.mubr.bf16.mxu0 0
    %96 = vmatmul.mubr.bf16.gmra.mxu0 %v61
    %v97 = vpop.f32.mrf.mxu0
    %v98 = vadd.f32 %v46, %v97
    %v99 = vpop.f32.mrf.mxu0
    %v100 = vpop.f32.mrf.mxu0
    %v101 = vpop.f32.mrf.mxu0
    %102 = vdwg.mxu0
    %v103 = vpack.c.bf16 %v98, %v98
    %104 = vst [vmem:[#allocation5] sm:$0x3] %v103
    %v105 = vld [vmem:[%s1] sm:$0x3]
    %s106 = scalar_lea.vmem [#allocation2], 16
    %v107 = vld [vmem:[%s106] sm:$0xf]
    %v108 = vld [vmem:[%s106 + $0x4] sm:$0xf]
    %v109 = vld [vmem:[%s106 + $0x8] sm:$0xf]
    %v110 = vld [vmem:[%s106 + $0xc] sm:$0xf]
    %s111 = scalar_lea.vmem %s4, 1
    %v112 = vld [vmem:[%s111] sm:$0x1]
    %v113 = vunpack.c.l.bf16 %v112
    %v114 = vlaneseq
    %v115 = vshrl.u32 %v114, 7
    %v116 = vsub.s32 0, %v115
    %v117 = vrot.slane %v113, %v116
    %v122 = vunpack.c.l.b16 %v107
    %v123 = vunpack.c.l.b16 %v108
    %v124 = vunpack.c.l.b16 %v109
    %v125 = vunpack.c.l.b16 %v110
    %v126 = vpack.c.b16 %v123, %v122
    %v127 = vpack.c.b16 %v125, %v124
    %v131 = vsel %vm59, %v105, 0
    %133 = vmatprep.subr.bf16.mxu0 0
    %134 = vmatpush1.bf16.msra.mxu0 0
    %135 = vmatprep.subr.bf16.mxu0 0
    %136 = vmatpush1.bf16.msra.mxu0 0
    %137 = vmatprep.subr.bf16.mxu0 0
    %138 = vmatpush1.bf16.msra.mxu0 0
    %139 = vmatprep.subr.bf16.mxu0 0
    %140 = vmatpush1.bf16.msra.mxu0 0
    %141 = vmatprep.subr.bf16.mxu0 0
    %142 = vmatpush1.bf16.msra.mxu0 0
    %143 = vmatprep.subr.bf16.mxu0 0
    %144 = vmatpush1.bf16.msra.mxu0 0
    %145 = vmatprep.subr.bf16.mxu0 0
    %146 = vmatpush1.bf16.msra.mxu0 %v127
    %147 = vmatprep.subr.bf16.mxu0 0
    %148 = vmatpush1.bf16.msra.mxu0 %v126
    %149 = vmatprep.subr.bf16.mxu0 0
    %150 = vmatpush2.bf16.msra.mxu0 0
    %151 = vmatprep.subr.bf16.mxu0 0
    %152 = vmatpush2.bf16.msra.mxu0 0
    %153 = vmatprep.subr.bf16.mxu0 0
    %154 = vmatpush2.bf16.msra.mxu0 0
    %155 = vmatprep.subr.bf16.mxu0 0
    %156 = vmatpush2.bf16.msra.mxu0 0
    %157 = vmatprep.subr.bf16.mxu0 0
    %158 = vmatpush2.bf16.msra.mxu0 0
    %159 = vmatprep.subr.bf16.mxu0 0
    %160 = vmatpush2.bf16.msra.mxu0 0
    %161 = vmatprep.subr.bf16.mxu0 0
    %162 = vmatpush2.bf16.msra.mxu0 0
    %163 = vmatprep.subr.bf16.mxu0 0
    %164 = vmatpush2.bf16.msra.mxu0 0
    %165 = vmatprep.mubr.bf16.mxu0 0
    %166 = vmatmul.mubr.bf16.gmra.mxu0 %v131
    %v167 = vpop.f32.mrf.mxu0
    %v168 = vadd.f32 %v117, %v167
    %v169 = vpop.f32.mrf.mxu0
    %v170 = vpop.f32.mrf.mxu0
    %v171 = vpop.f32.mrf.mxu0
    %172 = vdwg.mxu0
    %v173 = vpack.c.bf16 %v168, %v168
    %s174 = scalar_lea.vmem [#allocation5], 2
    %175 = vst [vmem:[%s174] sm:$0x3] %v173
    %v176 = vld [vmem:[%s2] sm:$0x3]
    %s177 = scalar_lea.vmem [#allocation2], 32
    %v178 = vld [vmem:[%s177] sm:$0xf]
    %v179 = vld [vmem:[%s177 + $0x4] sm:$0xf]
    %v180 = vld [vmem:[%s177 + $0x8] sm:$0xf]
    %v181 = vld [vmem:[%s177 + $0xc] sm:$0xf]
    %s182 = scalar_lea.vmem %s4, 2
    %v183 = vld [vmem:[%s182] sm:$0x1]
    %v184 = vunpack.c.l.bf16 %v183
    %v185 = vlaneseq
    %v186 = vshrl.u32 %v185, 7
    %v187 = vsub.s32 0, %v186
    %v188 = vrot.slane %v184, %v187
    %v193 = vunpack.c.l.b16 %v178
    %v194 = vunpack.c.l.b16 %v179
    %v195 = vunpack.c.l.b16 %v180
    %v196 = vunpack.c.l.b16 %v181
    %v197 = vpack.c.b16 %v194, %v193
    %v198 = vpack.c.b16 %v196, %v195
    %v202 = vsel %vm59, %v176, 0
    %204 = vmatprep.subr.bf16.mxu0 0
    %205 = vmatpush1.bf16.msra.mxu0 0
    %206 = vmatprep.subr.bf16.mxu0 0
    %207 = vmatpush1.bf16.msra.mxu0 0
    %208 = vmatprep.subr.bf16.mxu0 0
    %209 = vmatpush1.bf16.msra.mxu0 0
    %210 = vmatprep.subr.bf16.mxu0 0
    %211 = vmatpush1.bf16.msra.mxu0 0
    %212 = vmatprep.subr.bf16.mxu0 0
    %213 = vmatpush1.bf16.msra.mxu0 0
    %214 = vmatprep.subr.bf16.mxu0 0
    %215 = vmatpush1.bf16.msra.mxu0 0
    %216 = vmatprep.subr.bf16.mxu0 0
    %217 = vmatpush1.bf16.msra.mxu0 %v198
    %218 = vmatprep.subr.bf16.mxu0 0
    %219 = vmatpush1.bf16.msra.mxu0 %v197
    %220 = vmatprep.subr.bf16.mxu0 0
    %221 = vmatpush2.bf16.msra.mxu0 0
    %222 = vmatprep.subr.bf16.mxu0 0
    %223 = vmatpush2.bf16.msra.mxu0 0
    %224 = vmatprep.subr.bf16.mxu0 0
    %225 = vmatpush2.bf16.msra.mxu0 0
    %226 = vmatprep.subr.bf16.mxu0 0
    %227 = vmatpush2.bf16.msra.mxu0 0
    %228 = vmatprep.subr.bf16.mxu0 0
    %229 = vmatpush2.bf16.msra.mxu0 0
    %230 = vmatprep.subr.bf16.mxu0 0
    %231 = vmatpush2.bf16.msra.mxu0 0
    %232 = vmatprep.subr.bf16.mxu0 0
    %233 = vmatpush2.bf16.msra.mxu0 0
    %234 = vmatprep.subr.bf16.mxu0 0
    %235 = vmatpush2.bf16.msra.mxu0 0
    %236 = vmatprep.mubr.bf16.mxu0 0
    %237 = vmatmul.mubr.bf16.gmra.mxu0 %v202
    %v238 = vpop.f32.mrf.mxu0
    %v239 = vadd.f32 %v188, %v238
    %v240 = vpop.f32.mrf.mxu0
    %v241 = vpop.f32.mrf.mxu0
    %v242 = vpop.f32.mrf.mxu0
    %243 = vdwg.mxu0
    %v244 = vpack.c.bf16 %v239, %v239
    %s245 = scalar_lea.vmem [#allocation5], 4
    %246 = vst [vmem:[%s245] sm:$0x3] %v244
    // Predicated region
    $region26: #{_fwd.3} parent=1 // pred_check
      _
    $region27: #{_fwd.3} parent=1 // pred_check_branch
      %248 = sbr.rel (0) target = $region29
    $region28: #{_fwd.3} parent=1 // pred_region
      %s250 = ssub.s32 96, 96
      %251 = vsyncadd [#allocation4], %s250
      %s252 = sshll.u32 [#allocation5], 4
      %s253 = int_to_ptr.vmem [resolvable:$true] %s252
      %258 = dma.vmem_to_hbm [thread:$0]  %s253, 96, %s5, [#allocation4], 32, 32, 2
    $region29: #{_fwd.3} parent=1 // pred_fallthru
      _
    // Predicated region
    $region30: #{_fwd.3} parent=1 // pred_check
      _
    $region31: #{_fwd.3} parent=1 // pred_check_branch
      %260 = sbr.rel (0) target = $region33
    $region32: #{_fwd.3} parent=1 // pred_region
      %261 = dma.done [#allocation4], 96
    $region33: #{_fwd.3} parent=1 // pred_fallthru
      _
    %262 = vsyncpa [#allocation3], 1
    %263 = vsyncpa [#allocation4], 1

</llo_original>
